<compile_context>
chip_gen: v7x
topology: tpu7x:2x2x1
jax: 0.10.0
libtpu: 0.0.40
codegen_flags: <defaults>
</compile_context>

<pallas_src>
import jax
import jax.numpy as jnp
from jax.experimental import pallas as pl
from jax.experimental.pallas import tpu as pltpu

LANE = 128     # vreg lane width (last axis)
SUBLANE = 8    # vreg sublane count (second-to-last axis, f32)


def _round_up(n, m):
    return ((n + m - 1) // m) * m


def _pad_to(a, shape):
    pads = [(0, t - s) for s, t in zip(a.shape, shape)]
    if all(p == (0, 0) for p in pads):
        return a
    return jnp.pad(a, pads)


def _mlp_kernel(num_layers, in_size, ip):
    """Fused MLP forward kernel for a fixed (static) number of hidden layers."""

    def kernel(x_ref, w_in_ref, b_in_ref, w_h_ref, b_h_ref, w_out_ref, b_out_ref,
               o_ref, xpad_ref):
        # Zero-extend the narrow activation tile to the lane-dense contraction
        # width inside VMEM (zeroing + masked store per step is negligible vs the
        # matmuls, and avoids shipping an 8x-padded copy of x through HBM).
        if in_size == ip:
            x = x_ref[...]
        else:
            xpad_ref[...] = jnp.zeros_like(xpad_ref)
            xpad_ref[:, :in_size] = x_ref[...]
            x = xpad_ref[...]

        # Input layer (no activation, matching the PyTorch forward).
        # bf16 operands -> native MXU path; f32 accumulate; bias add in f32.
        h = jnp.dot(x.astype(jnp.bfloat16), w_in_ref[...],
                    preferred_element_type=jnp.float32) + b_in_ref[...]

        # Hidden layers: Linear + ReLU. Static unroll (fine for a handful of
        # layers); h is kept f32 between layers, only the dot operand is cast.
        for l in range(num_layers):
            h = jnp.maximum(
                jnp.dot(h.astype(jnp.bfloat16), w_h_ref[l],
                        preferred_element_type=jnp.float32) + b_h_ref[l],
                0.0)

        # Output layer + sigmoid. Lane-dense (padded) output -> unmasked stores.
        logits = jnp.dot(h.astype(jnp.bfloat16), w_out_ref[...],
                         preferred_element_type=jnp.float32) + b_out_ref[...]
        o_ref[...] = jax.nn.sigmoid(logits).astype(o_ref.dtype)

    return kernel


def prepare_params(params, *, weight_dtype=jnp.bfloat16):
    """One-time padding + cast of the parameter set (do NOT call per forward).

    Zero padding is exact: padded weight rows/cols and bias entries are zero, so
    padded hidden columns stay zero through the Linear+ReLU chain; padded output
    columns are sliced off after the kernel.
    """
    w_in, b_in = params["w_in"], params["b_in"]
    w_h, b_h = params["w_h"], params["b_h"]
    w_out, b_out = params["w_out"], params["b_out"]

    in_size, hidden = w_in.shape
    out_size = w_out.shape[1]
    num_layers = w_h.shape[0]

    ip = _round_up(in_size, LANE)
    hp = _round_up(hidden, LANE)
    op = _round_up(out_size, LANE)

    return {
        "w_in": _pad_to(w_in, (ip, hp)).astype(weight_dtype),
        "b_in": _pad_to(b_in, (1, hp)).astype(jnp.float32),
        "w_h": _pad_to(w_h, (num_layers, hp, hp)).astype(weight_dtype),
        "b_h": _pad_to(b_h, (num_layers, 1, hp)).astype(jnp.float32),
        "w_out": _pad_to(w_out, (hp, op)).astype(weight_dtype),
        "b_out": _pad_to(b_out, (1, op)).astype(jnp.float32),
        "in_size": int(in_size),
        "out_size": int(out_size),
    }


def simple_nn_forward(x, prep, *, block_batch=512):
    """Runs the fused MLP forward pass as a single Pallas kernel.

    x: (batch, input_size) float32
    prep: output of prepare_params().
    """
    w_in, b_in = prep["w_in"], prep["b_in"]
    w_h, b_h = prep["w_h"], prep["b_h"]
    w_out, b_out = prep["w_out"], prep["b_out"]
    in_size, out_size = prep["in_size"], prep["out_size"]

    batch = x.shape[0]
    assert x.shape[1] == in_size
    ip, hp = w_in.shape
    op = w_out.shape[1]
    num_layers = w_h.shape[0]

    # Batch tiling: at least 2 grid steps whenever batch allows (keeps both v7x
    # TensorCores busy under dimension_semantics=("parallel",)); tile size chosen
    # from the actual batch so ragged batches pad by < 8 rows, not a whole tile.
    n_tiles = max(pl.cdiv(batch, block_batch), 2)
    n_tiles = max(min(n_tiles, pl.cdiv(batch, SUBLANE)), 1)
    tb = _round_up(pl.cdiv(batch, n_tiles), SUBLANE)
    n_tiles = pl.cdiv(batch, tb)
    bp = n_tiles * tb

    # Only the batch axis of x is (possibly) padded; the feature dim stays narrow.
    xp = _pad_to(x.astype(jnp.float32), (bp, in_size))

    # Weights: full-array blocks pinned to block 0 -> VMEM-resident across grid steps.
    def pinned(shape):
        return pl.BlockSpec(shape, lambda i, _n=len(shape): (0,) * _n)

    flops = 2 * bp * (ip * hp + num_layers * hp * hp + hp * op)
    bytes_accessed = int(
        4 * (xp.size + b_in.size + b_h.size + b_out.size + bp * op)
        + w_in.dtype.itemsize * w_in.size
        + w_h.dtype.itemsize * w_h.size
        + w_out.dtype.itemsize * w_out.size)

    out = pl.pallas_call(
        _mlp_kernel(num_layers, in_size, ip),
        out_shape=jax.ShapeDtypeStruct((bp, op), jnp.float32),
        grid=(n_tiles,),
        in_specs=[
            pl.BlockSpec((tb, in_size), lambda i: (i, 0)),   # activations stream over batch
            pinned(w_in.shape),
            pinned(b_in.shape),
            pinned(w_h.shape),
            pinned(b_h.shape),
            pinned(w_out.shape),
            pinned(b_out.shape),
        ],
        out_specs=pl.BlockSpec((tb, op), lambda i: (i, 0)),
        scratch_shapes=[pltpu.VMEM((tb, ip), jnp.float32)],   # lane-dense x staging
        compiler_params=pltpu.CompilerParams(
            dimension_semantics=("parallel",)),               # shards batch over 2 TCs on v7x
        cost_estimate=pl.CostEstimate(
            flops=flops, transcendentals=2 * bp * op, bytes_accessed=bytes_accessed),
    )(xp, w_in, b_in, w_h, b_h, w_out, b_out)

    # Strip batch and feature padding.
    return out[:batch, :out_size]


def init_params(key, num_layers, input_size, hidden_size, output_size):
    """Deterministic synthetic parameter init (shapes match the PyTorch module)."""
    keys = jax.random.split(key, 6)
    scale_in = 1.0 / jnp.sqrt(input_size)
    scale_h = 1.0 / jnp.sqrt(hidden_size)
    return {
        "w_in": jax.random.uniform(keys[0], (input_size, hidden_size),
                                   jnp.float32, -scale_in, scale_in),
        "b_in": jax.random.uniform(keys[1], (1, hidden_size),
                                   jnp.float32, -scale_in, scale_in),
        "w_h": jax.random.uniform(keys[2], (num_layers, hidden_size, hidden_size),
                                  jnp.float32, -scale_h, scale_h),
        "b_h": jax.random.uniform(keys[3], (num_layers, 1, hidden_size),
                                  jnp.float32, -scale_h, scale_h),
        "w_out": jax.random.uniform(keys[4], (hidden_size, output_size),
                                    jnp.float32, -scale_h, scale_h),
        "b_out": jax.random.uniform(keys[5], (1, output_size),
                                    jnp.float32, -scale_h, scale_h),
    }


def reference_forward(x, params):
    """Pure-JAX f32 reference replicating the PyTorch forward."""
    h = x @ params["w_in"] + params["b_in"]
    for l in range(params["w_h"].shape[0]):
        h = jnp.maximum(h @ params["w_h"][l] + params["b_h"][l], 0.0)
    logits = h @ params["w_out"] + params["b_out"]
    return jax.nn.sigmoid(logits)


if __name__ == "__main__":
    num_layers = 3
    input_size = 16
    hidden_size = 32
    output_size = 8
    batch = 8

    key = jax.random.PRNGKey(0)
    k_x, k_p = jax.random.split(key)
    x = jax.random.normal(k_x, (batch, input_size), dtype=jnp.float32)
    params = init_params(k_p, num_layers, input_size, hidden_size, output_size)

    prep = prepare_params(params)               # one-time pad + bf16 cast
    out = simple_nn_forward(x, prep)
    out = jax.block_until_ready(out)

    ref = reference_forward(x, params)
    assert out.shape == (batch, output_size)
    # bf16 matmul operands with f32 accumulation -> tolerance loosened vs f32 reference.
    assert jnp.allclose(out, ref, atol=2e-2, rtol=2e-2), "Pallas output mismatch vs reference"

    print("KERNEL_OK")
</pallas_src>

<mosaic_0001>
module attributes {stable_mosaic.version = 11 : i64} {
  func.func @kernel(%arg0: i32, %arg1: memref<8x16xf32, #tpu.memory_space<vmem>>, %arg2: memref<128x128xbf16, #tpu.memory_space<vmem>>, %arg3: memref<1x128xf32, #tpu.memory_space<vmem>>, %arg4: memref<3x128x128xbf16, #tpu.memory_space<vmem>>, %arg5: memref<3x1x128xf32, #tpu.memory_space<vmem>>, %arg6: memref<128x128xbf16, #tpu.memory_space<vmem>>, %arg7: memref<1x128xf32, #tpu.memory_space<vmem>>, %arg8: memref<8x128xf32, #tpu.memory_space<vmem>>, %arg9: memref<8x128xf32, #tpu.memory_space<vmem>>) attributes {dimension_semantics = [#tpu.dimension_semantics<parallel>], iteration_bounds = array<i64: 1>, scalar_prefetch = 0 : i64, scratch_operands = 1 : i64, tpu.core_type = #tpu.core_type<tc>, window_params = [{transform_indices = @transform_0, window_bounds = array<i64: 8, 16>}, {pipeline_mode = #tpu.pipeline_mode<synchronous>, transform_indices = @transform_1, window_bounds = array<i64: 128, 128>}, {pipeline_mode = #tpu.pipeline_mode<synchronous>, transform_indices = @transform_2, window_bounds = array<i64: 1, 128>}, {pipeline_mode = #tpu.pipeline_mode<synchronous>, transform_indices = @transform_3, window_bounds = array<i64: 3, 128, 128>}, {pipeline_mode = #tpu.pipeline_mode<synchronous>, transform_indices = @transform_4, window_bounds = array<i64: 3, 1, 128>}, {pipeline_mode = #tpu.pipeline_mode<synchronous>, transform_indices = @transform_5, window_bounds = array<i64: 128, 128>}, {pipeline_mode = #tpu.pipeline_mode<synchronous>, transform_indices = @transform_6, window_bounds = array<i64: 1, 128>}, {transform_indices = @transform_7, window_bounds = array<i64: 8, 128>}]} {
    %cst = arith.constant 0.000000e+00 : f32
    %0 = vector.broadcast %cst : f32 to vector<8x128xf32>
    %c0 = arith.constant 0 : index
    %c0_0 = arith.constant 0 : index
    %1 = vector.load %arg9[%c0, %c0_0] : memref<8x128xf32, #tpu.memory_space<vmem>>, vector<8x128xf32>
    tpu.vector_store %arg9[%c0, %c0_0], %0 {strides = array<i32>} : memref<8x128xf32, #tpu.memory_space<vmem>>, vector<8x128xf32>,
    %c0_1 = arith.constant 0 : index
    %c0_2 = arith.constant 0 : index
    %2 = vector.load %arg1[%c0_1, %c0_2] : memref<8x16xf32, #tpu.memory_space<vmem>>, vector<8x16xf32>
    %c0_3 = arith.constant 0 : index
    %c0_4 = arith.constant 0 : index
    %3 = vector.load %arg9[%c0_3, %c0_4] : memref<8x128xf32, #tpu.memory_space<vmem>>, vector<8x16xf32>
    tpu.vector_store %arg9[%c0_3, %c0_4], %2 {strides = array<i32>} : memref<8x128xf32, #tpu.memory_space<vmem>>, vector<8x16xf32>,
    %c0_5 = arith.constant 0 : index
    %c0_6 = arith.constant 0 : index
    %4 = vector.load %arg9[%c0_5, %c0_6] : memref<8x128xf32, #tpu.memory_space<vmem>>, vector<8x128xf32>
    %5 = arith.truncf %4 : vector<8x128xf32> to vector<8x128xbf16>
    %c0_7 = arith.constant 0 : index
    %c0_8 = arith.constant 0 : index
    %6 = vector.load %arg2[%c0_7, %c0_8] : memref<128x128xbf16, #tpu.memory_space<vmem>>, vector<128x128xbf16>
    %cst_9 = arith.constant dense<0.000000e+00> : vector<8x128xf32>
    %7 = tpu.matmul %5, %6, %cst_9 {dimension_numbers = #tpu.dot_dimension_numbers<[1], [0], [0], [1], [0, 0, 1, 1], [], []>} : vector<8x128xbf16>, vector<128x128xbf16>, vector<8x128xf32> -> vector<8x128xf32>
    %c0_10 = arith.constant 0 : index
    %c0_11 = arith.constant 0 : index
    %8 = vector.load %arg3[%c0_10, %c0_11] : memref<1x128xf32, #tpu.memory_space<vmem>>, vector<1x128xf32>
    %9 = vector.broadcast %8 : vector<1x128xf32> to vector<8x128xf32>
    %10 = arith.addf %7, %9 : vector<8x128xf32>
    %11 = arith.truncf %10 : vector<8x128xf32> to vector<8x128xbf16>
    %c0_12 = arith.constant 0 : index
    %c0_13 = arith.constant 0 : index
    %c0_14 = arith.constant 0 : index
    %12 = vector.load %arg4[%c0_12, %c0_13, %c0_14] : memref<3x128x128xbf16, #tpu.memory_space<vmem>>, vector<1x128x128xbf16>
    %13 = vector.shape_cast %12 : vector<1x128x128xbf16> to vector<128x128xbf16>
    %cst_15 = arith.constant dense<0.000000e+00> : vector<8x128xf32>
    %14 = tpu.matmul %11, %13, %cst_15 {dimension_numbers = #tpu.dot_dimension_numbers<[1], [0], [0], [1], [0, 0, 1, 1], [], []>} : vector<8x128xbf16>, vector<128x128xbf16>, vector<8x128xf32> -> vector<8x128xf32>
    %c0_16 = arith.constant 0 : index
    %c0_17 = arith.constant 0 : index
    %c0_18 = arith.constant 0 : index
    %15 = vector.load %arg5[%c0_16, %c0_17, %c0_18] : memref<3x1x128xf32, #tpu.memory_space<vmem>>, vector<1x1x128xf32>
    %16 = vector.shape_cast %15 : vector<1x1x128xf32> to vector<1x128xf32>
    %17 = vector.broadcast %16 : vector<1x128xf32> to vector<8x128xf32>
    %18 = arith.addf %14, %17 : vector<8x128xf32>
    %cst_19 = arith.constant 0.000000e+00 : f32
    %19 = vector.broadcast %cst_19 : f32 to vector<8x128xf32>
    %20 = arith.maximumf %18, %19 : vector<8x128xf32>
    %21 = arith.truncf %20 : vector<8x128xf32> to vector<8x128xbf16>
    %c1 = arith.constant 1 : index
    %c0_20 = arith.constant 0 : index
    %c0_21 = arith.constant 0 : index
    %22 = vector.load %arg4[%c1, %c0_20, %c0_21] : memref<3x128x128xbf16, #tpu.memory_space<vmem>>, vector<1x128x128xbf16>
    %23 = vector.shape_cast %22 : vector<1x128x128xbf16> to vector<128x128xbf16>
    %cst_22 = arith.constant dense<0.000000e+00> : vector<8x128xf32>
    %24 = tpu.matmul %21, %23, %cst_22 {dimension_numbers = #tpu.dot_dimension_numbers<[1], [0], [0], [1], [0, 0, 1, 1], [], []>} : vector<8x128xbf16>, vector<128x128xbf16>, vector<8x128xf32> -> vector<8x128xf32>
    %c1_23 = arith.constant 1 : index
    %c0_24 = arith.constant 0 : index
    %c0_25 = arith.constant 0 : index
    %25 = vector.load %arg5[%c1_23, %c0_24, %c0_25] : memref<3x1x128xf32, #tpu.memory_space<vmem>>, vector<1x1x128xf32>
    %26 = vector.shape_cast %25 : vector<1x1x128xf32> to vector<1x128xf32>
    %27 = vector.broadcast %26 : vector<1x128xf32> to vector<8x128xf32>
    %28 = arith.addf %24, %27 : vector<8x128xf32>
    %cst_26 = arith.constant 0.000000e+00 : f32
    %29 = vector.broadcast %cst_26 : f32 to vector<8x128xf32>
    %30 = arith.maximumf %28, %29 : vector<8x128xf32>
    %31 = arith.truncf %30 : vector<8x128xf32> to vector<8x128xbf16>
    %c2 = arith.constant 2 : index
    %c0_27 = arith.constant 0 : index
    %c0_28 = arith.constant 0 : index
    %32 = vector.load %arg4[%c2, %c0_27, %c0_28] : memref<3x128x128xbf16, #tpu.memory_space<vmem>>, vector<1x128x128xbf16>
    %33 = vector.shape_cast %32 : vector<1x128x128xbf16> to vector<128x128xbf16>
    %cst_29 = arith.constant dense<0.000000e+00> : vector<8x128xf32>
    %34 = tpu.matmul %31, %33, %cst_29 {dimension_numbers = #tpu.dot_dimension_numbers<[1], [0], [0], [1], [0, 0, 1, 1], [], []>} : vector<8x128xbf16>, vector<128x128xbf16>, vector<8x128xf32> -> vector<8x128xf32>
    %c2_30 = arith.constant 2 : index
    %c0_31 = arith.constant 0 : index
    %c0_32 = arith.constant 0 : index
    %35 = vector.load %arg5[%c2_30, %c0_31, %c0_32] : memref<3x1x128xf32, #tpu.memory_space<vmem>>, vector<1x1x128xf32>
    %36 = vector.shape_cast %35 : vector<1x1x128xf32> to vector<1x128xf32>
    %37 = vector.broadcast %36 : vector<1x128xf32> to vector<8x128xf32>
    %38 = arith.addf %34, %37 : vector<8x128xf32>
    %cst_33 = arith.constant 0.000000e+00 : f32
    %39 = vector.broadcast %cst_33 : f32 to vector<8x128xf32>
    %40 = arith.maximumf %38, %39 : vector<8x128xf32>
    %41 = arith.truncf %40 : vector<8x128xf32> to vector<8x128xbf16>
    %c0_34 = arith.constant 0 : index
    %c0_35 = arith.constant 0 : index
    %42 = vector.load %arg6[%c0_34, %c0_35] : memref<128x128xbf16, #tpu.memory_space<vmem>>, vector<128x128xbf16>
    %cst_36 = arith.constant dense<0.000000e+00> : vector<8x128xf32>
    %43 = tpu.matmul %41, %42, %cst_36 {dimension_numbers = #tpu.dot_dimension_numbers<[1], [0], [0], [1], [0, 0, 1, 1], [], []>} : vector<8x128xbf16>, vector<128x128xbf16>, vector<8x128xf32> -> vector<8x128xf32>
    %c0_37 = arith.constant 0 : index
    %c0_38 = arith.constant 0 : index
    %44 = vector.load %arg7[%c0_37, %c0_38] : memref<1x128xf32, #tpu.memory_space<vmem>>, vector<1x128xf32>
    %45 = vector.broadcast %44 : vector<1x128xf32> to vector<8x128xf32>
    %46 = arith.addf %43, %45 : vector<8x128xf32>
    %47 = arith.negf %46 : vector<8x128xf32>
    %48 = math.exp %47 : vector<8x128xf32>
    %cst_39 = arith.constant 1.000000e+00 : f32
    %49 = vector.broadcast %cst_39 : f32 to vector<8x128xf32>
    %50 = arith.addf %49, %48 : vector<8x128xf32>
    %51 = arith.divf %49, %50 : vector<8x128xf32>
    %c0_40 = arith.constant 0 : index
    %c0_41 = arith.constant 0 : index
    %52 = vector.load %arg8[%c0_40, %c0_41] : memref<8x128xf32, #tpu.memory_space<vmem>>, vector<8x128xf32>
    tpu.vector_store %arg8[%c0_40, %c0_41], %51 {strides = array<i32>} : memref<8x128xf32, #tpu.memory_space<vmem>>, vector<8x128xf32>,
    return
  }
  func.func @transform_0(%arg0: i32) -> (i32, i32) {
    %c0_i32 = arith.constant 0 : i32
    %c0_i32_0 = arith.constant 0 : i32
    return %arg0, %c0_i32 : i32, i32
  }
  func.func @transform_1(%arg0: i32) -> (i32, i32) {
    %c0_i32 = arith.constant 0 : i32
    %c0_i32_0 = arith.constant 0 : i32
    %c0_i32_1 = arith.constant 0 : i32
    return %c0_i32, %c0_i32_0 : i32, i32
  }
  func.func @transform_2(%arg0: i32) -> (i32, i32) {
    %c0_i32 = arith.constant 0 : i32
    %c0_i32_0 = arith.constant 0 : i32
    %c0_i32_1 = arith.constant 0 : i32
    return %c0_i32, %c0_i32_0 : i32, i32
  }
  func.func @transform_3(%arg0: i32) -> (i32, i32, i32) {
    %c0_i32 = arith.constant 0 : i32
    %c0_i32_0 = arith.constant 0 : i32
    %c0_i32_1 = arith.constant 0 : i32
    %c0_i32_2 = arith.constant 0 : i32
    return %c0_i32, %c0_i32_0, %c0_i32_1 : i32, i32, i32
  }
  func.func @transform_4(%arg0: i32) -> (i32, i32, i32) {
    %c0_i32 = arith.constant 0 : i32
    %c0_i32_0 = arith.constant 0 : i32
    %c0_i32_1 = arith.constant 0 : i32
    %c0_i32_2 = arith.constant 0 : i32
    return %c0_i32, %c0_i32_0, %c0_i32_1 : i32, i32, i32
  }
  func.func @transform_5(%arg0: i32) -> (i32, i32) {
    %c0_i32 = arith.constant 0 : i32
    %c0_i32_0 = arith.constant 0 : i32
    %c0_i32_1 = arith.constant 0 : i32
    return %c0_i32, %c0_i32_0 : i32, i32
  }
  func.func @transform_6(%arg0: i32) -> (i32, i32) {
    %c0_i32 = arith.constant 0 : i32
    %c0_i32_0 = arith.constant 0 : i32
    %c0_i32_1 = arith.constant 0 : i32
    return %c0_i32, %c0_i32_0 : i32, i32
  }
  func.func @transform_7(%arg0: i32) -> (i32, i32) {
    %c0_i32 = arith.constant 0 : i32
    %c0_i32_0 = arith.constant 0 : i32
    return %arg0, %c0_i32 : i32, i32
  }
}

</mosaic_0001>

<llo_original>
// kernel: tpu_custom_call.1
$region0: #{tpu_custom_call.1}
  #allocation0 [shape = 'u32[]', space=smem, size = 0x4, offset = 0x4, fixed_abs, tag = 'smem constant byte address 0x4 - core index']
  #allocation1 [shape = 'u32[144,128]{1,0:T(1,128)}', space=vmem, size = 0x12000, scoped, tag = 'internal scratch']
  #allocation2 [shape = 'f32[8,128]{1,0:T(8,128)}', space=vmem, size = 0x1000, scoped, tag = 'scratch operand']
  %s0 = inlined_call_operand.hbm [shape: f32[8,16], index: 0, kind: input, shape index: {}]
  %s1 = inlined_call_operand.hbm [shape: bf16[128,128], index: 1, kind: input, shape index: {}]
  %s2 = inlined_call_operand.vmem [shape: f32[1,128], index: 2, kind: input, shape index: {}]
  %s3 = inlined_call_operand.hbm [shape: bf16[3,128,128], index: 3, kind: input, shape index: {}]
  %s4 = inlined_call_operand.vmem [shape: f32[3,1,128], index: 4, kind: input, shape index: {}]
  %s5 = inlined_call_operand.hbm [shape: bf16[128,128], index: 5, kind: input, shape index: {}]
  %s6 = inlined_call_operand.vmem [shape: f32[1,128], index: 6, kind: input, shape index: {}]
  %s7 = inlined_call_operand.hbm [shape: f32[8,128], index: 7, kind: output, shape index: {}]
  %s8 = sld [smem:[#allocation0]]
  $region54: #{tpu_custom_call.1} parent=0
    _
  %s10 = ssub.s32 1, %s8
  %s11 = scalar_select 0, %s10, %s8
  $region1: #{tpu_custom_call.1} parent=0
    #allocation3 [shape = 'u8[4096]{0}', space=vmem, size = 0x1000, scoped, tag = 'input window, operand 0, single buffered']
    #allocation4 [shape = 's32[1]{0}', space=sflag, size = 0x4, scoped, tag = 'scoped memory for tpu_custom_call.1']
    #allocation5 [shape = 's32[1]{0}', space=sflag, size = 0x4, scoped, tag = 'scoped memory for tpu_custom_call.1']
    #allocation6 [shape = 'u8[32768]{0}', space=vmem, size = 0x8000, scoped, tag = 'input window, operand 1, single buffered']
    #allocation7 [shape = 's32[1]{0}', space=sflag, size = 0x4, scoped, tag = 'scoped memory for tpu_custom_call.1']
    #allocation8 [shape = 'u8[98304]{0}', space=vmem, size = 0x18000, scoped, tag = 'input window, operand 3, single buffered']
    #allocation9 [shape = 'u8[32768]{0}', space=vmem, size = 0x8000, scoped, tag = 'input window, operand 5, single buffered']
    #allocation10 [shape = 's32[1]{0}', space=sflag, size = 0x4, scoped, tag = 'scoped memory for tpu_custom_call.1']
    #allocation11 [shape = 'u8[4096]{0}', space=vmem, size = 0x1000, scoped, tag = 'output window, operand 0, single buffered']
    %12 = vsyncpa [#allocation4], 0
    %13 = vsyncpa [#allocation7], 0
    %14 = vsyncpa [#allocation10], 0
    %15 = vsyncpa [#allocation5], 0
    // Predicated region
    $region2: #{tpu_custom_call.1} parent=1 // pred_check
      _
    $region3: #{tpu_custom_call.1} parent=1 // pred_check_branch
      %17 = sbr.rel (0) target = $region5
    $region4: #{tpu_custom_call.1} parent=1 // pred_region
      %s19 = ssub.s32 128, 128
      %20 = vsyncadd [#allocation4], %s19
      %s22 = sshll.u32 [#allocation3], 4
      %s23 = int_to_ptr.vmem [resolvable:$true] %s22
      %25 = dma.hbm_to_vmem [thread:$0]  %s0, 128, %s23, [#allocation4]
    $region5: #{tpu_custom_call.1} parent=1 // pred_fallthru
      _
    // Predicated region
    $region6: #{tpu_custom_call.1} parent=1 // pred_check
      _
    $region7: #{tpu_custom_call.1} parent=1 // pred_check_branch
      %27 = sbr.rel (0) target = $region9
    $region8: #{tpu_custom_call.1} parent=1 // pred_region
      %s29 = ssub.s32 1024, 1024
      %30 = vsyncadd [#allocation7], %s29
      %s31 = sshll.u32 [#allocation6], 4
      %s32 = int_to_ptr.vmem [resolvable:$true] %s31
      %37 = dma.hbm_to_vmem [thread:$0]  %s1, 1024, %s32, [#allocation7], 64, 64, 4
    $region9: #{tpu_custom_call.1} parent=1 // pred_fallthru
      _
    // Predicated region
    $region10: #{tpu_custom_call.1} parent=1 // pred_check
      _
    $region11: #{tpu_custom_call.1} parent=1 // pred_check_branch
      %39 = sbr.rel (0) target = $region13
    $region12: #{tpu_custom_call.1} parent=1 // pred_region
      _
    $region13: #{tpu_custom_call.1} parent=1 // pred_fallthru
      _
    // Predicated region
    $region14: #{tpu_custom_call.1} parent=1 // pred_check
      _
    $region15: #{tpu_custom_call.1} parent=1 // pred_check_branch
      %41 = sbr.rel (0) target = $region17
    $region16: #{tpu_custom_call.1} parent=1 // pred_region
      %s43 = ssub.s32 3072, 3072
      %44 = vsyncadd [#allocation7], %s43
      %s45 = sshll.u32 [#allocation8], 4
      %s46 = int_to_ptr.vmem [resolvable:$true] %s45
      %51 = dma.hbm_to_vmem [thread:$0]  %s3, 3072, %s46, [#allocation7], 64, 64, 4
    $region17: #{tpu_custom_call.1} parent=1 // pred_fallthru
      _
    // Predicated region
    $region18: #{tpu_custom_call.1} parent=1 // pred_check
      _
    $region19: #{tpu_custom_call.1} parent=1 // pred_check_branch
      %53 = sbr.rel (0) target = $region21
    $region20: #{tpu_custom_call.1} parent=1 // pred_region
      _
    $region21: #{tpu_custom_call.1} parent=1 // pred_fallthru
      _
    // Predicated region
    $region22: #{tpu_custom_call.1} parent=1 // pred_check
      _
    $region23: #{tpu_custom_call.1} parent=1 // pred_check_branch
      %55 = sbr.rel (0) target = $region25
    $region24: #{tpu_custom_call.1} parent=1 // pred_region
      %s57 = ssub.s32 1024, 1024
      %58 = vsyncadd [#allocation10], %s57
      %s59 = sshll.u32 [#allocation9], 4
      %s60 = int_to_ptr.vmem [resolvable:$true] %s59
      %65 = dma.hbm_to_vmem [thread:$0]  %s5, 1024, %s60, [#allocation10], 64, 64, 4
    $region25: #{tpu_custom_call.1} parent=1 // pred_fallthru
      _
    // Predicated region
    $region26: #{tpu_custom_call.1} parent=1 // pred_check
      _
    $region27: #{tpu_custom_call.1} parent=1 // pred_check_branch
      %67 = sbr.rel (0) target = $region29
    $region28: #{tpu_custom_call.1} parent=1 // pred_region
      _
    $region29: #{tpu_custom_call.1} parent=1 // pred_fallthru
      _
    // Predicated region
    $region30: #{tpu_custom_call.1} parent=1 // pred_check
      _
    $region31: #{tpu_custom_call.1} parent=1 // pred_check_branch
      %69 = sbr.rel (0) target = $region33
    $region32: #{tpu_custom_call.1} parent=1 // pred_region
      %70 = dma.done [#allocation4], 128
    $region33: #{tpu_custom_call.1} parent=1 // pred_fallthru
      _
    // Predicated region
    $region34: #{tpu_custom_call.1} parent=1 // pred_check
      _
    $region35: #{tpu_custom_call.1} parent=1 // pred_check_branch
      %72 = sbr.rel (0) target = $region37
    $region36: #{tpu_custom_call.1} parent=1 // pred_region
      %73 = dma.done [#allocation7], 1024
    $region37: #{tpu_custom_call.1} parent=1 // pred_fallthru
      _
    // Predicated region
    $region38: #{tpu_custom_call.1} parent=1 // pred_check
      _
    $region39: #{tpu_custom_call.1} parent=1 // pred_check_branch
      %75 = sbr.rel (0) target = $region41
    $region40: #{tpu_custom_call.1} parent=1 // pred_region
      %76 = dma.done [#allocation7], 3072
    $region41: #{tpu_custom_call.1} parent=1 // pred_fallthru
      _
    // Predicated region
    $region42: #{tpu_custom_call.1} parent=1 // pred_check
      _
    $region43: #{tpu_custom_call.1} parent=1 // pred_check_branch
      %78 = sbr.rel (0) target = $region45
    $region44: #{tpu_custom_call.1} parent=1 // pred_region
      %79 = dma.done [#allocation10], 1024
    $region45: #{tpu_custom_call.1} parent=1 // pred_fallthru
      _
    %81 = vst [vmem:[#allocation2] sm:$0xff] 0.0
    %v82 = vld [vmem:[#allocation3] sm:$0xff]
    %vm83 = vcmask 130048
    %84 = vst.msk [vmem:[#allocation2] sm:$0xff] %vm83, %v82
    %v85 = vld [vmem:[#allocation2] sm:$0xff]
    %v86 = vpack.c.bf16 %v85, %v85
    %v87 = vld [vmem:[#allocation6] sm:$0xf]
    %v88 = vld [vmem:[#allocation6 + $0x4] sm:$0xf]
    %v89 = vld [vmem:[#allocation6 + $0x8] sm:$0xf]
    %v90 = vld [vmem:[#allocation6 + $0xc] sm:$0xf]
    %v91 = vld [vmem:[#allocation6 + $0x10] sm:$0xf]
    %v92 = vld [vmem:[#allocation6 + $0x14] sm:$0xf]
    %v93 = vld [vmem:[#allocation6 + $0x18] sm:$0xf]
    %v94 = vld [vmem:[#allocation6 + $0x1c] sm:$0xf]
    %v95 = vld [vmem:[#allocation6 + $0x20] sm:$0xf]
    %v96 = vld [vmem:[#allocation6 + $0x24] sm:$0xf]
    %v97 = vld [vmem:[#allocation6 + $0x28] sm:$0xf]
    %v98 = vld [vmem:[#allocation6 + $0x2c] sm:$0xf]
    %v99 = vld [vmem:[#allocation6 + $0x30] sm:$0xf]
    %v100 = vld [vmem:[#allocation6 + $0x34] sm:$0xf]
    %v101 = vld [vmem:[#allocation6 + $0x38] sm:$0xf]
    %v102 = vld [vmem:[#allocation6 + $0x3c] sm:$0xf]
    %v103 = vld [vmem:[%s2] sm:$0x1]
    %v105 = vlaneseq
    %v106 = vshrl.u32 %v105, 7
    %v107 = vsub.s32 0, %v106
    %v108 = vrot.slane %v103, %v107
    %v126 = vunpack.c.l.b16 %v87
    %v127 = vunpack.c.l.b16 %v88
    %v128 = vunpack.c.l.b16 %v89
    %v129 = vunpack.c.l.b16 %v90
    %v130 = vunpack.c.l.b16 %v91
    %v131 = vunpack.c.l.b16 %v92
    %v132 = vunpack.c.l.b16 %v93
    %v133 = vunpack.c.l.b16 %v94
    %v134 = vunpack.c.l.b16 %v95
    %v135 = vunpack.c.l.b16 %v96
    %v136 = vunpack.c.l.b16 %v97
    %v137 = vunpack.c.l.b16 %v98
    %v138 = vunpack.c.l.b16 %v99
    %v139 = vunpack.c.l.b16 %v100
    %v140 = vunpack.c.l.b16 %v101
    %v141 = vunpack.c.l.b16 %v102
    %v142 = vpack.c.b16 %v127, %v126
    %v143 = vpack.c.b16 %v129, %v128
    %v144 = vpack.c.b16 %v131, %v130
    %v145 = vpack.c.b16 %v133, %v132
    %v146 = vpack.c.b16 %v135, %v134
    %v147 = vpack.c.b16 %v137, %v136
    %v148 = vpack.c.b16 %v139, %v138
    %v149 = vpack.c.b16 %v141, %v140
    %158 = vmatprep.subr.bf16.mxu0 0
    %159 = vmatpush1.bf16.msra.mxu0 %v142
    %160 = vmatprep.subr.bf16.mxu0 0
    %161 = vmatpush1.bf16.msra.mxu0 %v143
    %162 = vmatprep.subr.bf16.mxu0 0
    %163 = vmatpush1.bf16.msra.mxu0 %v144
    %164 = vmatprep.subr.bf16.mxu0 0
    %165 = vmatpush1.bf16.msra.mxu0 %v145
    %166 = vmatprep.subr.bf16.mxu0 0
    %167 = vmatpush1.bf16.msra.mxu0 %v146
    %168 = vmatprep.subr.bf16.mxu0 0
    %169 = vmatpush1.bf16.msra.mxu0 %v147
    %170 = vmatprep.subr.bf16.mxu0 0
    %171 = vmatpush1.bf16.msra.mxu0 %v148
    %172 = vmatprep.subr.bf16.mxu0 0
    %173 = vmatpush1.bf16.msra.mxu0 %v149
    %174 = vmatprep.subr.bf16.mxu0 0
    %175 = vmatpush1.bf16.msra.mxu0 0
    %176 = vmatprep.subr.bf16.mxu0 0
    %177 = vmatpush1.bf16.msra.mxu0 0
    %178 = vmatprep.subr.bf16.mxu0 0
    %179 = vmatpush1.bf16.msra.mxu0 0
    %180 = vmatprep.subr.bf16.mxu0 0
    %181 = vmatpush1.bf16.msra.mxu0 0
    %182 = vmatprep.subr.bf16.mxu0 0
    %183 = vmatpush1.bf16.msra.mxu0 0
    %184 = vmatprep.subr.bf16.mxu0 0
    %185 = vmatpush1.bf16.msra.mxu0 0
    %186 = vmatprep.subr.bf16.mxu0 0
    %187 = vmatpush1.bf16.msra.mxu0 0
    %188 = vmatprep.subr.bf16.mxu0 0
    %189 = vmatpush1.bf16.msra.mxu0 0
    %190 = vmatprep.mubr.bf16.mxu0 0
    %191 = vmatmul.mubr.bf16.gmra.mrb[0].mxu0 %v86
    %v192 = vpop.f32.mrb[0].mxu0
    %v193 = vadd.f32 %v108, %v192
    %v194 = vpop.f32.mrb[0].mxu0
    %v195 = vpop.f32.mrb[0].mxu0
    %v196 = vpop.f32.mrb[0].mxu0
    %197 = vdwg.mxu0
    %v198 = vpack.c.bf16 %v193, %v193
    %v199 = vld [vmem:[#allocation8] sm:$0xf]
    %v200 = vld [vmem:[#allocation8 + $0x4] sm:$0xf]
    %v201 = vld [vmem:[#allocation8 + $0x8] sm:$0xf]
    %v202 = vld [vmem:[#allocation8 + $0xc] sm:$0xf]
    %v203 = vld [vmem:[#allocation8 + $0x10] sm:$0xf]
    %v204 = vld [vmem:[#allocation8 + $0x14] sm:$0xf]
    %v205 = vld [vmem:[#allocation8 + $0x18] sm:$0xf]
    %v206 = vld [vmem:[#allocation8 + $0x1c] sm:$0xf]
    %v207 = vld [vmem:[#allocation8 + $0x20] sm:$0xf]
    %v208 = vld [vmem:[#allocation8 + $0x24] sm:$0xf]
    %v209 = vld [vmem:[#allocation8 + $0x28] sm:$0xf]
    %v210 = vld [vmem:[#allocation8 + $0x2c] sm:$0xf]
    %v211 = vld [vmem:[#allocation8 + $0x30] sm:$0xf]
    %v212 = vld [vmem:[#allocation8 + $0x34] sm:$0xf]
    %v213 = vld [vmem:[#allocation8 + $0x38] sm:$0xf]
    %v214 = vld [vmem:[#allocation8 + $0x3c] sm:$0xf]
    %v215 = vld [vmem:[%s4] sm:$0x1]
    %v217 = vlaneseq
    %v218 = vshrl.u32 %v217, 7
    %v219 = vsub.s32 0, %v218
    %v220 = vrot.slane %v215, %v219
    %v238 = vunpack.c.l.b16 %v199
    %v239 = vunpack.c.l.b16 %v200
    %v240 = vunpack.c.l.b16 %v201
    %v241 = vunpack.c.l.b16 %v202
    %v242 = vunpack.c.l.b16 %v203
    %v243 = vunpack.c.l.b16 %v204
    %v244 = vunpack.c.l.b16 %v205
    %v245 = vunpack.c.l.b16 %v206
    %v246 = vunpack.c.l.b16 %v207
    %v247 = vunpack.c.l.b16 %v208
    %v248 = vunpack.c.l.b16 %v209
    %v249 = vunpack.c.l.b16 %v210
    %v250 = vunpack.c.l.b16 %v211
    %v251 = vunpack.c.l.b16 %v212
    %v252 = vunpack.c.l.b16 %v213
    %v253 = vunpack.c.l.b16 %v214
    %v254 = vpack.c.b16 %v239, %v238
    %v255 = vpack.c.b16 %v241, %v240
    %v256 = vpack.c.b16 %v243, %v242
    %v257 = vpack.c.b16 %v245, %v244
    %v258 = vpack.c.b16 %v247, %v246
    %v259 = vpack.c.b16 %v249, %v248
    %v260 = vpack.c.b16 %v251, %v250
    %v261 = vpack.c.b16 %v253, %v252
    %270 = vmatprep.subr.bf16.mxu0 0
    %271 = vmatpush1.bf16.msra.mxu0 %v254
    %272 = vmatprep.subr.bf16.mxu0 0
    %273 = vmatpush1.bf16.msra.mxu0 %v255
    %274 = vmatprep.subr.bf16.mxu0 0
    %275 = vmatpush1.bf16.msra.mxu0 %v256
    %276 = vmatprep.subr.bf16.mxu0 0
    %277 = vmatpush1.bf16.msra.mxu0 %v257
    %278 = vmatprep.subr.bf16.mxu0 0
    %279 = vmatpush1.bf16.msra.mxu0 %v258
    %280 = vmatprep.subr.bf16.mxu0 0
    %281 = vmatpush1.bf16.msra.mxu0 %v259
    %282 = vmatprep.subr.bf16.mxu0 0
    %283 = vmatpush1.bf16.msra.mxu0 %v260
    %284 = vmatprep.subr.bf16.mxu0 0
    %285 = vmatpush1.bf16.msra.mxu0 %v261
    %286 = vmatprep.subr.bf16.mxu0 0
    %287 = vmatpush1.bf16.msra.mxu0 0
    %288 = vmatprep.subr.bf16.mxu0 0
    %289 = vmatpush1.bf16.msra.mxu0 0
    %290 = vmatprep.subr.bf16.mxu0 0
    %291 = vmatpush1.bf16.msra.mxu0 0
    %292 = vmatprep.subr.bf16.mxu0 0
    %293 = vmatpush1.bf16.msra.mxu0 0
    %294 = vmatprep.subr.bf16.mxu0 0
    %295 = vmatpush1.bf16.msra.mxu0 0
    %296 = vmatprep.subr.bf16.mxu0 0
    %297 = vmatpush1.bf16.msra.mxu0 0
    %298 = vmatprep.subr.bf16.mxu0 0
    %299 = vmatpush1.bf16.msra.mxu0 0
    %300 = vmatprep.subr.bf16.mxu0 0
    %301 = vmatpush1.bf16.msra.mxu0 0
    %302 = vmatprep.mubr.bf16.mxu0 0
    %303 = vmatmul.mubr.bf16.gmra.mrb[0].mxu0 %v198
    %v304 = vpop.f32.mrb[0].mxu0
    %v305 = vadd.f32 %v220, %v304
    %v306 = vpop.f32.mrb[0].mxu0
    %v307 = vpop.f32.mrb[0].mxu0
    %v308 = vpop.f32.mrb[0].mxu0
    %309 = vdwg.mxu0
    %v310 = vmax.f32 %v305, 0.0
    %v311 = vpack.c.bf16 %v310, %v310
    %s312 = scalar_lea.vmem [#allocation8], 64
    %v313 = vld [vmem:[%s312] sm:$0xf]
    %v314 = vld [vmem:[%s312 + $0x4] sm:$0xf]
    %v315 = vld [vmem:[%s312 + $0x8] sm:$0xf]
    %v316 = vld [vmem:[%s312 + $0xc] sm:$0xf]
    %v317 = vld [vmem:[%s312 + $0x10] sm:$0xf]
    %v318 = vld [vmem:[%s312 + $0x14] sm:$0xf]
    %v319 = vld [vmem:[%s312 + $0x18] sm:$0xf]
    %v320 = vld [vmem:[%s312 + $0x1c] sm:$0xf]
    %v321 = vld [vmem:[%s312 + $0x20] sm:$0xf]
    %v322 = vld [vmem:[%s312 + $0x24] sm:$0xf]
    %v323 = vld [vmem:[%s312 + $0x28] sm:$0xf]
    %v324 = vld [vmem:[%s312 + $0x2c] sm:$0xf]
    %v325 = vld [vmem:[%s312 + $0x30] sm:$0xf]
    %v326 = vld [vmem:[%s312 + $0x34] sm:$0xf]
    %v327 = vld [vmem:[%s312 + $0x38] sm:$0xf]
    %v328 = vld [vmem:[%s312 + $0x3c] sm:$0xf]
    %s329 = scalar_lea.vmem %s4, 1
    %v330 = vld [vmem:[%s329] sm:$0x1]
    %v332 = vlaneseq
    %v333 = vshrl.u32 %v332, 7
    %v334 = vsub.s32 0, %v333
    %v335 = vrot.slane %v330, %v334
    %v353 = vunpack.c.l.b16 %v313
    %v354 = vunpack.c.l.b16 %v314
    %v355 = vunpack.c.l.b16 %v315
    %v356 = vunpack.c.l.b16 %v316
    %v357 = vunpack.c.l.b16 %v317
    %v358 = vunpack.c.l.b16 %v318
    %v359 = vunpack.c.l.b16 %v319
    %v360 = vunpack.c.l.b16 %v320
    %v361 = vunpack.c.l.b16 %v321
    %v362 = vunpack.c.l.b16 %v322
    %v363 = vunpack.c.l.b16 %v323
    %v364 = vunpack.c.l.b16 %v324
    %v365 = vunpack.c.l.b16 %v325
    %v366 = vunpack.c.l.b16 %v326
    %v367 = vunpack.c.l.b16 %v327
    %v368 = vunpack.c.l.b16 %v328
    %v369 = vpack.c.b16 %v354, %v353
    %v370 = vpack.c.b16 %v356, %v355
    %v371 = vpack.c.b16 %v358, %v357
    %v372 = vpack.c.b16 %v360, %v359
    %v373 = vpack.c.b16 %v362, %v361
    %v374 = vpack.c.b16 %v364, %v363
    %v375 = vpack.c.b16 %v366, %v365
    %v376 = vpack.c.b16 %v368, %v367
    %385 = vmatprep.subr.bf16.mxu0 0
    %386 = vmatpush1.bf16.msra.mxu0 %v369
    %387 = vmatprep.subr.bf16.mxu0 0
    %388 = vmatpush1.bf16.msra.mxu0 %v370
    %389 = vmatprep.subr.bf16.mxu0 0
    %390 = vmatpush1.bf16.msra.mxu0 %v371
    %391 = vmatprep.subr.bf16.mxu0 0
    %392 = vmatpush1.bf16.msra.mxu0 %v372
    %393 = vmatprep.subr.bf16.mxu0 0
    %394 = vmatpush1.bf16.msra.mxu0 %v373
    %395 = vmatprep.subr.bf16.mxu0 0
    %396 = vmatpush1.bf16.msra.mxu0 %v374
    %397 = vmatprep.subr.bf16.mxu0 0
    %398 = vmatpush1.bf16.msra.mxu0 %v375
    %399 = vmatprep.subr.bf16.mxu0 0
    %400 = vmatpush1.bf16.msra.mxu0 %v376
    %401 = vmatprep.subr.bf16.mxu0 0
    %402 = vmatpush1.bf16.msra.mxu0 0
    %403 = vmatprep.subr.bf16.mxu0 0
    %404 = vmatpush1.bf16.msra.mxu0 0
    %405 = vmatprep.subr.bf16.mxu0 0
    %406 = vmatpush1.bf16.msra.mxu0 0
    %407 = vmatprep.subr.bf16.mxu0 0
    %408 = vmatpush1.bf16.msra.mxu0 0
    %409 = vmatprep.subr.bf16.mxu0 0
    %410 = vmatpush1.bf16.msra.mxu0 0
    %411 = vmatprep.subr.bf16.mxu0 0
    %412 = vmatpush1.bf16.msra.mxu0 0
    %413 = vmatprep.subr.bf16.mxu0 0
    %414 = vmatpush1.bf16.msra.mxu0 0
    %415 = vmatprep.subr.bf16.mxu0 0
    %416 = vmatpush1.bf16.msra.mxu0 0
    %417 = vmatprep.mubr.bf16.mxu0 0
    %418 = vmatmul.mubr.bf16.gmra.mrb[0].mxu0 %v311
    %v419 = vpop.f32.mrb[0].mxu0
    %v420 = vadd.f32 %v335, %v419
    %v421 = vpop.f32.mrb[0].mxu0
    %v422 = vpop.f32.mrb[0].mxu0
    %v423 = vpop.f32.mrb[0].mxu0
    %424 = vdwg.mxu0
    %v425 = vmax.f32 %v420, 0.0
    %v426 = vpack.c.bf16 %v425, %v425
    %s427 = scalar_lea.vmem [#allocation8], 128
    %v428 = vld [vmem:[%s427] sm:$0xf]
    %v429 = vld [vmem:[%s427 + $0x4] sm:$0xf]
    %v430 = vld [vmem:[%s427 + $0x8] sm:$0xf]
    %v431 = vld [vmem:[%s427 + $0xc] sm:$0xf]
    %v432 = vld [vmem:[%s427 + $0x10] sm:$0xf]
    %v433 = vld [vmem:[%s427 + $0x14] sm:$0xf]
    %v434 = vld [vmem:[%s427 + $0x18] sm:$0xf]
    %v435 = vld [vmem:[%s427 + $0x1c] sm:$0xf]
    %v436 = vld [vmem:[%s427 + $0x20] sm:$0xf]
    %v437 = vld [vmem:[%s427 + $0x24] sm:$0xf]
    %v438 = vld [vmem:[%s427 + $0x28] sm:$0xf]
    %v439 = vld [vmem:[%s427 + $0x2c] sm:$0xf]
    %v440 = vld [vmem:[%s427 + $0x30] sm:$0xf]
    %v441 = vld [vmem:[%s427 + $0x34] sm:$0xf]
    %v442 = vld [vmem:[%s427 + $0x38] sm:$0xf]
    %v443 = vld [vmem:[%s427 + $0x3c] sm:$0xf]
    %s444 = scalar_lea.vmem %s4, 2
    %v445 = vld [vmem:[%s444] sm:$0x1]
    %v447 = vlaneseq
    %v448 = vshrl.u32 %v447, 7
    %v449 = vsub.s32 0, %v448
    %v450 = vrot.slane %v445, %v449
    %v468 = vunpack.c.l.b16 %v428
    %v469 = vunpack.c.l.b16 %v429
    %v470 = vunpack.c.l.b16 %v430
    %v471 = vunpack.c.l.b16 %v431
    %v472 = vunpack.c.l.b16 %v432
    %v473 = vunpack.c.l.b16 %v433
    %v474 = vunpack.c.l.b16 %v434
    %v475 = vunpack.c.l.b16 %v435
    %v476 = vunpack.c.l.b16 %v436
    %v477 = vunpack.c.l.b16 %v437
    %v478 = vunpack.c.l.b16 %v438
    %v479 = vunpack.c.l.b16 %v439
    %v480 = vunpack.c.l.b16 %v440
    %v481 = vunpack.c.l.b16 %v441
    %v482 = vunpack.c.l.b16 %v442
    %v483 = vunpack.c.l.b16 %v443
    %v484 = vpack.c.b16 %v469, %v468
    %v485 = vpack.c.b16 %v471, %v470
    %v486 = vpack.c.b16 %v473, %v472
    %v487 = vpack.c.b16 %v475, %v474
    %v488 = vpack.c.b16 %v477, %v476
    %v489 = vpack.c.b16 %v479, %v478
    %v490 = vpack.c.b16 %v481, %v480
    %v491 = vpack.c.b16 %v483, %v482
    %500 = vmatprep.subr.bf16.mxu0 0
    %501 = vmatpush1.bf16.msra.mxu0 %v484
    %502 = vmatprep.subr.bf16.mxu0 0
    %503 = vmatpush1.bf16.msra.mxu0 %v485
    %504 = vmatprep.subr.bf16.mxu0 0
    %505 = vmatpush1.bf16.msra.mxu0 %v486
    %506 = vmatprep.subr.bf16.mxu0 0
    %507 = vmatpush1.bf16.msra.mxu0 %v487
    %508 = vmatprep.subr.bf16.mxu0 0
    %509 = vmatpush1.bf16.msra.mxu0 %v488
    %510 = vmatprep.subr.bf16.mxu0 0
    %511 = vmatpush1.bf16.msra.mxu0 %v489
    %512 = vmatprep.subr.bf16.mxu0 0
    %513 = vmatpush1.bf16.msra.mxu0 %v490
    %514 = vmatprep.subr.bf16.mxu0 0
    %515 = vmatpush1.bf16.msra.mxu0 %v491
    %516 = vmatprep.subr.bf16.mxu0 0
    %517 = vmatpush1.bf16.msra.mxu0 0
    %518 = vmatprep.subr.bf16.mxu0 0
    %519 = vmatpush1.bf16.msra.mxu0 0
    %520 = vmatprep.subr.bf16.mxu0 0
    %521 = vmatpush1.bf16.msra.mxu0 0
    %522 = vmatprep.subr.bf16.mxu0 0
    %523 = vmatpush1.bf16.msra.mxu0 0
    %524 = vmatprep.subr.bf16.mxu0 0
    %525 = vmatpush1.bf16.msra.mxu0 0
    %526 = vmatprep.subr.bf16.mxu0 0
    %527 = vmatpush1.bf16.msra.mxu0 0
    %528 = vmatprep.subr.bf16.mxu0 0
    %529 = vmatpush1.bf16.msra.mxu0 0
    %530 = vmatprep.subr.bf16.mxu0 0
    %531 = vmatpush1.bf16.msra.mxu0 0
    %532 = vmatprep.mubr.bf16.mxu0 0
    %533 = vmatmul.mubr.bf16.gmra.mrb[0].mxu0 %v426
    %v534 = vpop.f32.mrb[0].mxu0
    %v535 = vadd.f32 %v450, %v534
    %v536 = vpop.f32.mrb[0].mxu0
    %v537 = vpop.f32.mrb[0].mxu0
    %v538 = vpop.f32.mrb[0].mxu0
    %539 = vdwg.mxu0
    %v540 = vmax.f32 %v535, 0.0
    %v541 = vpack.c.bf16 %v540, %v540
    %v542 = vld [vmem:[#allocation9] sm:$0xf]
    %v543 = vld [vmem:[#allocation9 + $0x4] sm:$0xf]
    %v544 = vld [vmem:[#allocation9 + $0x8] sm:$0xf]
    %v545 = vld [vmem:[#allocation9 + $0xc] sm:$0xf]
    %v546 = vld [vmem:[#allocation9 + $0x10] sm:$0xf]
    %v547 = vld [vmem:[#allocation9 + $0x14] sm:$0xf]
    %v548 = vld [vmem:[#allocation9 + $0x18] sm:$0xf]
    %v549 = vld [vmem:[#allocation9 + $0x1c] sm:$0xf]
    %v550 = vld [vmem:[#allocation9 + $0x20] sm:$0xf]
    %v551 = vld [vmem:[#allocation9 + $0x24] sm:$0xf]
    %v552 = vld [vmem:[#allocation9 + $0x28] sm:$0xf]
    %v553 = vld [vmem:[#allocation9 + $0x2c] sm:$0xf]
    %v554 = vld [vmem:[#allocation9 + $0x30] sm:$0xf]
    %v555 = vld [vmem:[#allocation9 + $0x34] sm:$0xf]
    %v556 = vld [vmem:[#allocation9 + $0x38] sm:$0xf]
    %v557 = vld [vmem:[#allocation9 + $0x3c] sm:$0xf]
    %v558 = vld [vmem:[%s6] sm:$0x1]
    %v560 = vlaneseq
    %v561 = vshrl.u32 %v560, 7
    %v562 = vsub.s32 0, %v561
    %v563 = vrot.slane %v558, %v562
    %v581 = vunpack.c.l.b16 %v542
    %v582 = vunpack.c.l.b16 %v543
    %v583 = vunpack.c.l.b16 %v544
    %v584 = vunpack.c.l.b16 %v545
    %v585 = vunpack.c.l.b16 %v546
    %v586 = vunpack.c.l.b16 %v547
    %v587 = vunpack.c.l.b16 %v548
    %v588 = vunpack.c.l.b16 %v549
    %v589 = vunpack.c.l.b16 %v550
    %v590 = vunpack.c.l.b16 %v551
    %v591 = vunpack.c.l.b16 %v552
    %v592 = vunpack.c.l.b16 %v553
    %v593 = vunpack.c.l.b16 %v554
    %v594 = vunpack.c.l.b16 %v555
    %v595 = vunpack.c.l.b16 %v556
    %v596 = vunpack.c.l.b16 %v557
    %v597 = vpack.c.b16 %v582, %v581
    %v598 = vpack.c.b16 %v584, %v583
    %v599 = vpack.c.b16 %v586, %v585
    %v600 = vpack.c.b16 %v588, %v587
    %v601 = vpack.c.b16 %v590, %v589
    %v602 = vpack.c.b16 %v592, %v591
    %v603 = vpack.c.b16 %v594, %v593
    %v604 = vpack.c.b16 %v596, %v595
    %613 = vmatprep.subr.bf16.mxu0 0
    %614 = vmatpush1.bf16.msra.mxu0 %v597
    %615 = vmatprep.subr.bf16.mxu0 0
    %616 = vmatpush1.bf16.msra.mxu0 %v598
    %617 = vmatprep.subr.bf16.mxu0 0
    %618 = vmatpush1.bf16.msra.mxu0 %v599
    %619 = vmatprep.subr.bf16.mxu0 0
    %620 = vmatpush1.bf16.msra.mxu0 %v600
    %621 = vmatprep.subr.bf16.mxu0 0
    %622 = vmatpush1.bf16.msra.mxu0 %v601
    %623 = vmatprep.subr.bf16.mxu0 0
    %624 = vmatpush1.bf16.msra.mxu0 %v602
    %625 = vmatprep.subr.bf16.mxu0 0
    %626 = vmatpush1.bf16.msra.mxu0 %v603
    %627 = vmatprep.subr.bf16.mxu0 0
    %628 = vmatpush1.bf16.msra.mxu0 %v604
    %629 = vmatprep.subr.bf16.mxu0 0
    %630 = vmatpush1.bf16.msra.mxu0 0
    %631 = vmatprep.subr.bf16.mxu0 0
    %632 = vmatpush1.bf16.msra.mxu0 0
    %633 = vmatprep.subr.bf16.mxu0 0
    %634 = vmatpush1.bf16.msra.mxu0 0
    %635 = vmatprep.subr.bf16.mxu0 0
    %636 = vmatpush1.bf16.msra.mxu0 0
    %637 = vmatprep.subr.bf16.mxu0 0
    %638 = vmatpush1.bf16.msra.mxu0 0
    %639 = vmatprep.subr.bf16.mxu0 0
    %640 = vmatpush1.bf16.msra.mxu0 0
    %641 = vmatprep.subr.bf16.mxu0 0
    %642 = vmatpush1.bf16.msra.mxu0 0
    %643 = vmatprep.subr.bf16.mxu0 0
    %644 = vmatpush1.bf16.msra.mxu0 0
    %645 = vmatprep.mubr.bf16.mxu0 0
    %646 = vmatmul.mubr.bf16.gmra.mrb[0].mxu0 %v541
    %v647 = vpop.f32.mrb[0].mxu0
    %v648 = vadd.f32 %v563, %v647
    %v649 = vpop.f32.mrb[0].mxu0
    %v650 = vpop.f32.mrb[0].mxu0
    %v651 = vpop.f32.mrb[0].mxu0
    %652 = vdwg.mxu0
    %v653 = vxor.u32 %v648, 2147483648
    %v654 = vmul.f32 %v653, 1.442695
    %v655 = vpow.pop %v654
    %v656 = vadd.f32 %v655, 1.0
    %v657 = vrcp.pop %v656
    %v658 = vmul.f32 1.0, %v657
    %659 = vst [vmem:[#allocation11] sm:$0xff] %v658
    // Predicated region
    $region46: #{tpu_custom_call.1} parent=1 // pred_check
      _
    $region47: #{tpu_custom_call.1} parent=1 // pred_check_branch
      %661 = sbr.rel (0) target = $region49
    $region48: #{tpu_custom_call.1} parent=1 // pred_region
      %s663 = ssub.s32 128, 128
      %664 = vsyncadd [#allocation5], %s663
      %s666 = sshll.u32 [#allocation11], 4
      %s667 = int_to_ptr.vmem [resolvable:$true] %s666
      %669 = dma.vmem_to_hbm [thread:$0]  %s667, 128, %s7, [#allocation5]
    $region49: #{tpu_custom_call.1} parent=1 // pred_fallthru
      _
    // Predicated region
    $region50: #{tpu_custom_call.1} parent=1 // pred_check
      _
    $region51: #{tpu_custom_call.1} parent=1 // pred_check_branch
      %671 = sbr.rel (0) target = $region53
    $region52: #{tpu_custom_call.1} parent=1 // pred_region
      %672 = dma.done [#allocation5], 128
    $region53: #{tpu_custom_call.1} parent=1 // pred_fallthru
      _
    %673 = vsyncpa [#allocation4], 1
    %674 = vsyncpa [#allocation7], 1
    %675 = vsyncpa [#allocation10], 1
    %676 = vsyncpa [#allocation5], 1

</llo_original>
